<compile_context>
chip_gen: v6e
topology: v6e:2x2x1
jax: 0.10.0
libtpu: 0.0.40
codegen_flags: <defaults>
</compile_context>

<pallas_src>
import jax
import jax.numpy as jnp
from jax.experimental import pallas as pl
from jax.experimental.pallas import tpu as pltpu


def _tanhshrink_kernel(x_ref, o_ref):
    x = x_ref[...]
    xf = x.astype(jnp.float32)          # explicit f32 math (v5e has no bf16 EUP)
    o_ref[...] = (xf - jnp.tanh(xf)).astype(o_ref.dtype)


def _sublane_multiple(dtype) -> int:
    # 32-bit -> 8 sublanes, 16-bit -> 16, 8-bit -> 32 (vreg packing rule).
    itemsize = jnp.dtype(dtype).itemsize
    return max(8, 32 // itemsize)


def tanhshrink(x, *, target_block_bytes=4 * 1024 * 1024):
    """Elementwise tanhshrink via Pallas. Works for any shape / float dtype."""
    orig_shape = x.shape
    dtype = x.dtype
    n = int(x.size)
    itemsize = jnp.dtype(dtype).itemsize
    sub = _sublane_multiple(dtype)

    # ---- choose a wide lane dimension (multiple of 128) --------------------
    # Prefer the widest candidate that divides n exactly: then reshape is a
    # free metadata op and no pad / post-slice HBM passes are needed.
    W = None
    for w in (4096, 2048, 1024, 512, 256, 128):
        if n % w == 0:
            W = w
            break

    if W is not None:
        rows = n // W
        x2d = x.reshape(rows, W)
        padded = False
    else:
        # Rare unaligned case: pad once up to a (sub, W) slab.
        W = 1024 if n >= 1024 * sub else 128
        rows = pl.cdiv(pl.cdiv(n, W), sub) * sub
        n_pad = rows * W
        x2d = jnp.pad(x.reshape(-1), (0, n_pad - n)).reshape(rows, W)
        padded = True

    # ---- choose a row tile so each block is ~target_block_bytes ------------
    tr = (target_block_bytes // (W * itemsize)) // sub * sub
    tr = max(tr, sub)
    if tr >= rows:
        tr = rows  # full-extent row block (always legal, even if rows < sub)
        # If the whole slab fits in one block but is big enough to be worth
        # sharding across two TensorCores (v7x megacore), split it in two.
        if rows % (2 * sub) == 0 and rows * W * itemsize >= (1 << 20):
            tr = rows // 2

    grid = (pl.cdiv(rows, tr),)  # ragged last block handled by Pallas masking

    out2d = pl.pallas_call(
        _tanhshrink_kernel,
        out_shape=jax.ShapeDtypeStruct((rows, W), dtype),
        grid_spec=pltpu.PrefetchScalarGridSpec(
            num_scalar_prefetch=0,
            grid=grid,
            in_specs=[pl.BlockSpec((tr, W), lambda i: (i, 0))],
            out_specs=pl.BlockSpec((tr, W), lambda i: (i, 0)),
        ),
        compiler_params=pltpu.CompilerParams(
            dimension_semantics=("parallel",),
            vmem_limit_bytes=32 * 1024 * 1024,  # 2 bufs x (in+out) x 4 MiB = 16 MiB
        ),
    )(x2d)

    if padded:
        return out2d.reshape(-1)[:n].reshape(orig_shape)
    return out2d.reshape(orig_shape)


if __name__ == "__main__":
    key = jax.random.PRNGKey(0)
    # NCHW input, matching the PyTorch module's typical use.
    x = jax.random.normal(key, (2, 4, 16, 16), dtype=jnp.float32)

    out = jax.block_until_ready(tanhshrink(x))

    # Correctness check against plain-JAX reference.
    ref = x - jnp.tanh(x)
    assert out.shape == x.shape and out.dtype == x.dtype
    assert jnp.allclose(out, ref, atol=1e-6, rtol=1e-6)

    print("KERNEL_OK")
</pallas_src>

<mosaic_0001>
module attributes {stable_mosaic.version = 11 : i64} {
  func.func @_tanhshrink_kernel(%arg0: i32, %arg1: memref<1x2048xf32, #tpu.memory_space<vmem>>, %arg2: memref<1x2048xf32, #tpu.memory_space<vmem>>) attributes {dimension_semantics = [#tpu.dimension_semantics<parallel>], iteration_bounds = array<i64: 1>, scalar_prefetch = 0 : i64, scratch_operands = 0 : i64, tpu.core_type = #tpu.core_type<tc>, window_params = [{transform_indices = @transform_0, window_bounds = array<i64: 1, 2048>}, {transform_indices = @transform_1, window_bounds = array<i64: 1, 2048>}]} {
    %c0 = arith.constant 0 : index
    %c0_0 = arith.constant 0 : index
    %0 = vector.load %arg1[%c0, %c0_0] : memref<1x2048xf32, #tpu.memory_space<vmem>>, vector<1x2048xf32>
    %1 = math.tanh %0 : vector<1x2048xf32>
    %2 = arith.subf %0, %1 : vector<1x2048xf32>
    %c0_1 = arith.constant 0 : index
    %c0_2 = arith.constant 0 : index
    %3 = vector.load %arg2[%c0_1, %c0_2] : memref<1x2048xf32, #tpu.memory_space<vmem>>, vector<1x2048xf32>
    tpu.vector_store %arg2[%c0_1, %c0_2], %2 {strides = array<i32>} : memref<1x2048xf32, #tpu.memory_space<vmem>>, vector<1x2048xf32>,
    return
  }
  func.func @transform_0(%arg0: i32) -> (i32, i32) {
    %c0_i32 = arith.constant 0 : i32
    %c0_i32_0 = arith.constant 0 : i32
    return %arg0, %c0_i32 : i32, i32
  }
  func.func @transform_1(%arg0: i32) -> (i32, i32) {
    %c0_i32 = arith.constant 0 : i32
    %c0_i32_0 = arith.constant 0 : i32
    return %arg0, %c0_i32 : i32, i32
  }
}

</mosaic_0001>

<llo_original>
// kernel: tpu_custom_call.1
$region0: #{tpu_custom_call.1}
  #allocation0 [shape = 'u32[]', space=smem, size = 0x4, offset = 0x4, fixed_abs, tag = 'smem constant byte address 0x4 - core index']
  #allocation1 [shape = 'u32[144,128]{1,0:T(1,128)}', space=vmem, size = 0x12000, scoped, tag = 'internal scratch']
  %s0 = inlined_call_operand.hbm [shape: f32[1,2048], index: 0, kind: input, shape index: {}]
  %s1 = inlined_call_operand.hbm [shape: f32[1,2048], index: 1, kind: output, shape index: {}]
  %s2 = sld [smem:[#allocation0]]
  $region18: #{tpu_custom_call.1} parent=0
    _
  %s4 = ssub.s32 1, %s2
  %s5 = scalar_select 0, %s4, %s2
  $region1: #{tpu_custom_call.1} parent=0
    #allocation2 [shape = 'u8[8192]{0}', space=vmem, size = 0x2000, scoped, tag = 'input window, operand 0, single buffered']
    #allocation3 [shape = 's32[1]{0}', space=sflag, size = 0x4, scoped, tag = 'scoped memory for tpu_custom_call.1']
    #allocation4 [shape = 's32[1]{0}', space=sflag, size = 0x4, scoped, tag = 'scoped memory for tpu_custom_call.1']
    #allocation5 [shape = 'u8[8192]{0}', space=vmem, size = 0x2000, scoped, tag = 'output window, operand 0, single buffered']
    %6 = vsyncpa [#allocation3], 0
    %7 = vsyncpa [#allocation4], 0
    // Predicated region
    $region2: #{tpu_custom_call.1} parent=1 // pred_check
      _
    $region3: #{tpu_custom_call.1} parent=1 // pred_check_branch
      %9 = sbr.rel (0) target = $region5
    $region4: #{tpu_custom_call.1} parent=1 // pred_region
      %s11 = ssub.s32 256, 256
      %12 = vsyncadd [#allocation3], %s11
      %s14 = sshll.u32 [#allocation2], 4
      %s15 = int_to_ptr.vmem [resolvable:$true] %s14
      %17 = dma.hbm_to_vmem [thread:$0]  %s0, 256, %s15, [#allocation3]
    $region5: #{tpu_custom_call.1} parent=1 // pred_fallthru
      _
    // Predicated region
    $region6: #{tpu_custom_call.1} parent=1 // pred_check
      _
    $region7: #{tpu_custom_call.1} parent=1 // pred_check_branch
      %19 = sbr.rel (0) target = $region9
    $region8: #{tpu_custom_call.1} parent=1 // pred_region
      %20 = dma.done [#allocation3], 256
    $region9: #{tpu_custom_call.1} parent=1 // pred_fallthru
      _
    %v21 = vld [vmem:[#allocation2] sm:$0xff]
    %v22 = vld [vmem:[#allocation2 + $0x8] sm:$0xff]
    %v23 = vtanh.pop %v21
    %v24 = vtanh.pop %v22
    %v25 = vsub.f32 %v21, %v23
    %v26 = vsub.f32 %v22, %v24
    %27 = vst [vmem:[#allocation5] sm:$0xff] %v25
    %28 = vst [vmem:[#allocation5 + $0x8] sm:$0xff] %v26
    // Predicated region
    $region10: #{tpu_custom_call.1} parent=1 // pred_check
      _
    $region11: #{tpu_custom_call.1} parent=1 // pred_check_branch
      %30 = sbr.rel (0) target = $region13
    $region12: #{tpu_custom_call.1} parent=1 // pred_region
      %s32 = ssub.s32 256, 256
      %33 = vsyncadd [#allocation4], %s32
      %s35 = sshll.u32 [#allocation5], 4
      %s36 = int_to_ptr.vmem [resolvable:$true] %s35
      %38 = dma.vmem_to_hbm [thread:$0]  %s36, 256, %s1, [#allocation4]
    $region13: #{tpu_custom_call.1} parent=1 // pred_fallthru
      _
    // Predicated region
    $region14: #{tpu_custom_call.1} parent=1 // pred_check
      _
    $region15: #{tpu_custom_call.1} parent=1 // pred_check_branch
      %40 = sbr.rel (0) target = $region17
    $region16: #{tpu_custom_call.1} parent=1 // pred_region
      %41 = dma.done [#allocation4], 256
    $region17: #{tpu_custom_call.1} parent=1 // pred_fallthru
      _
    %42 = vsyncpa [#allocation3], 1
    %43 = vsyncpa [#allocation4], 1

</llo_original>
